<compile_context>
chip_gen: v6e
topology: v6e:2x2x1
jax: 0.10.0
libtpu: 0.0.40
codegen_flags: <defaults>
</compile_context>

<pallas_src>
import functools

import numpy as np
import jax
import jax.numpy as jnp
from jax.experimental import pallas as pl
from jax.experimental.pallas import tpu as pltpu


# ---------------------------------------------------------------------------
# Synthetic, deterministic "config" (the original module only reads constants
# from a config module; it has no learnable parameters).
# ---------------------------------------------------------------------------
IMG_SIZE = 32
NUM_LANDMARKS = 68
INDS = [0, 1, 2, 3, 4, 5, 6, 7]
AU_CENTERS_LEFT = [21, 22, 23, 19, 41, 38, 48, 33, 50, 60]
AU_CENTERS_RIGHT = [20, 25, 24, 18, 46, 43, 54, 35, 52, 64]
LOCATION_SCALE = [0.0, 0.5, 1.0, -0.5, 2.0, 1.5, -1.0, 0.25, 0.75, -2.0]

CENTER_LEFT = [AU_CENTERS_LEFT[i] for i in INDS]
CENTER_RIGHT = [AU_CENTERS_RIGHT[i] for i in INDS]
LOC_SCALE = [LOCATION_SCALE[i] for i in INDS]
K = len(INDS)  # number of AU centers per side


# ---------------------------------------------------------------------------
# Gather kernel: one grid step handles B_TILE batches.  The feature slab is
# streamed into VMEM by the BlockSpec pipeline; the 2*K spatial positions are
# picked with a one-hot matmul (exact: products are x*1 or x*0, f32 accum).
# ---------------------------------------------------------------------------
def _gather_kernel(idx_ref, feat_ref, enc_ref, dec_ref, *, n_centers):
    feat = feat_ref[...]                                  # (BT, C, HW)
    idx = idx_ref[...]                                    # (BT, 1, 2K) int32
    bt, _, hw = feat.shape
    n_rows = idx.shape[-1]

    # One-hot selection matrix over the flattened spatial axis.
    pos = jax.lax.broadcasted_iota(jnp.int32, (bt, hw, n_rows), 1)
    onehot = (pos == idx).astype(feat.dtype)              # (BT, HW, 2K)

    # gathered[b, c, k] = sum_j feat[b, c, j] * onehot[b, j, k]
    # lhs (C, HW) and rhs (HW, 2K) are already in MXU-natural orientation.
    gathered = jax.lax.dot_general(
        feat, onehot,
        dimension_numbers=(((2,), (1,)), ((0,), (0,))),
        preferred_element_type=jnp.float32)                # (BT, C, 2K)
    gathered = gathered.astype(enc_ref.dtype)

    enc_ref[...] = gathered[:, :, :n_centers]
    dec_ref[...] = gathered[:, :, n_centers:]


def _pick_batch_tile(b, c, hw, itemsize):
    """Largest divisor of b that keeps >=2 grid steps when b > 1 (v7x megacore)
    and keeps the double-buffered feature slab under ~8 MiB (safe within
    v7x's 64 MiB VMEM / default scoped limit)."""
    slab_bytes = max(1, c * hw * itemsize)
    vmem_cap = max(1, (8 * 1024 * 1024) // slab_bytes)
    target = max(1, min(vmem_cap, -(-b // 2)))             # cdiv(b, 2)
    for t in range(min(target, b), 0, -1):
        if b % t == 0:
            return t
    return 1


# ---------------------------------------------------------------------------
# Wrapper: tiny index math (plain jnp) + the slab-streamed gather kernel.
# ---------------------------------------------------------------------------
@jax.jit
def feature_extraction(tensor, landmarks):
    B, C, H, W = tensor.shape
    if H != W:
        # The reference module clamps x (H index) with W-1 and y (W index)
        # with H-1; that is only well-defined for square maps.
        raise ValueError("FeatureExtraction requires a square feature map (H == W).")
    spatial_scale = min(H, W) / IMG_SIZE

    # Free, metadata-only reshape (merges trailing contiguous dims, no
    # transpose, no HBM pass): NCHW -> (B, C, H*W).
    feat = tensor.reshape(B, C, H * W)

    cl = jnp.asarray(CENTER_LEFT, dtype=jnp.int32)
    cr = jnp.asarray(CENTER_RIGHT, dtype=jnp.int32)
    loc = jnp.asarray(LOC_SCALE, dtype=jnp.float32)

    ruler = jnp.abs(landmarks[:, 0, 22] - landmarks[:, 0, 25])        # (B,)
    scales = ruler[:, None] * loc[None, :]                            # (B, K)

    def to_flat(x, y):
        # torch: stack((x, y)).round() ; (* spatial_scale).round().long() ; clamp
        xi = jnp.round(jnp.round(x) * spatial_scale).astype(jnp.int32)
        yi = jnp.round(jnp.round(y) * spatial_scale).astype(jnp.int32)
        # Mirrors PyTorch exactly: x (indexes H) clamped to W-1, y (indexes W)
        # clamped to H-1.  Safe because H == W is enforced above.
        xi = jnp.clip(xi, 0, W - 1)
        yi = jnp.clip(yi, 0, H - 1)
        return xi * W + yi

    idx_l = to_flat(landmarks[:, 0, cl], landmarks[:, 1, cl] + scales)   # (B, K)
    idx_r = to_flat(landmarks[:, 0, cr], landmarks[:, 1, cr] + scales)   # (B, K)
    n_rows = 2 * K
    # (B, 1, 2K) so every BlockSpec's last-two dims equal the full array dims.
    idx = jnp.concatenate([idx_l, idx_r], axis=1).reshape(B, 1, n_rows)

    bt = _pick_batch_tile(B, C, H * W, tensor.dtype.itemsize)
    grid = (B // bt,)

    enc_cm, dec_cm = pl.pallas_call(
        functools.partial(_gather_kernel, n_centers=K),
        grid=grid,
        in_specs=[
            pl.BlockSpec((bt, 1, n_rows), lambda t: (t, 0, 0)),      # indices
            pl.BlockSpec((bt, C, H * W), lambda t: (t, 0, 0)),       # feature slab
        ],
        out_specs=[
            pl.BlockSpec((bt, C, K), lambda t: (t, 0, 0)),           # to_encoder (C-major)
            pl.BlockSpec((bt, C, K), lambda t: (t, 0, 0)),           # to_decoder (C-major)
        ],
        out_shape=[
            jax.ShapeDtypeStruct((B, C, K), tensor.dtype),
            jax.ShapeDtypeStruct((B, C, K), tensor.dtype),
        ],
        compiler_params=pltpu.CompilerParams(
            dimension_semantics=("parallel",)),
    )(idx, feat)

    # Only this tiny (B, C, K) block is transposed; the feature tensor itself
    # never goes through an HBM transpose.
    to_encoder = jnp.swapaxes(enc_cm, 1, 2)
    to_decoder = jnp.swapaxes(dec_cm, 1, 2)
    return to_encoder, to_decoder


# ---------------------------------------------------------------------------
# Pure numpy reference reproducing the PyTorch forward semantics.
# ---------------------------------------------------------------------------
def reference(tensor, landmarks):
    t = np.asarray(tensor)
    lm = np.asarray(landmarks)
    B, C, H, W = t.shape
    ruler = np.abs(lm[:, 0, 22] - lm[:, 0, 25])
    scales = ruler[:, None] * np.array(LOC_SCALE, np.float32)
    clx = lm[:, 0, CENTER_LEFT]
    crx = lm[:, 0, CENTER_RIGHT]
    cly = lm[:, 1, CENTER_LEFT] + scales
    cry = lm[:, 1, CENTER_RIGHT] + scales
    left = np.stack((clx, cly), axis=1).round()
    right = np.stack((crx, cry), axis=1).round()
    ss = min(H, W) / IMG_SIZE
    left = np.rint(left * ss).astype(np.int64)
    right = np.rint(right * ss).astype(np.int64)
    left[:, 0] = np.clip(left[:, 0], 0, W - 1)
    left[:, 1] = np.clip(left[:, 1], 0, H - 1)
    right[:, 0] = np.clip(right[:, 0], 0, W - 1)
    right[:, 1] = np.clip(right[:, 1], 0, H - 1)
    enc = np.zeros((B, K, C), np.float32)
    dec = np.zeros((B, K, C), np.float32)
    for b in range(B):
        for k in range(K):
            enc[b, k] = t[b, :, left[b, 0, k], left[b, 1, k]]
            dec[b, k] = t[b, :, right[b, 0, k], right[b, 1, k]]
    return enc, dec


if __name__ == "__main__":
    key = jax.random.PRNGKey(0)
    k1, k2 = jax.random.split(key)
    B, C, H, W = 2, 4, 16, 16
    tensor = jax.random.normal(k1, (B, C, H, W), dtype=jnp.float32)
    landmarks = jax.random.uniform(
        k2, (B, 2, NUM_LANDMARKS), dtype=jnp.float32, minval=0.0,
        maxval=float(IMG_SIZE))

    to_enc, to_dec = feature_extraction(tensor, landmarks)
    jax.block_until_ready((to_enc, to_dec))

    ref_enc, ref_dec = reference(tensor, landmarks)
    # The gather is exact up to the MXU f32 pass rounding (any indexing error
    # would show up as O(1) mismatches, far above this tolerance).
    np.testing.assert_allclose(np.asarray(to_enc), ref_enc, rtol=1e-4, atol=1e-4)
    np.testing.assert_allclose(np.asarray(to_dec), ref_dec, rtol=1e-4, atol=1e-4)

    print("KERNEL_OK")
</pallas_src>

<mosaic_0001>
module attributes {stable_mosaic.version = 11 : i64} {
  func.func @_gather_kernel(%arg0: i32, %arg1: memref<1x1x16xi32, #tpu.memory_space<vmem>>, %arg2: memref<1x4x256xf32, #tpu.memory_space<vmem>>, %arg3: memref<1x4x8xf32, #tpu.memory_space<vmem>>, %arg4: memref<1x4x8xf32, #tpu.memory_space<vmem>>) attributes {dimension_semantics = [#tpu.dimension_semantics<parallel>], iteration_bounds = array<i64: 2>, scalar_prefetch = 0 : i64, scratch_operands = 0 : i64, tpu.core_type = #tpu.core_type<tc>, window_params = [{transform_indices = @transform_0, window_bounds = array<i64: 1, 1, 16>}, {transform_indices = @transform_1, window_bounds = array<i64: 1, 4, 256>}, {transform_indices = @transform_2, window_bounds = array<i64: 1, 4, 8>}, {transform_indices = @transform_3, window_bounds = array<i64: 1, 4, 8>}]} {
    %c0 = arith.constant 0 : index
    %c0_0 = arith.constant 0 : index
    %c0_1 = arith.constant 0 : index
    %0 = vector.load %arg2[%c0, %c0_0, %c0_1] : memref<1x4x256xf32, #tpu.memory_space<vmem>>, vector<1x4x256xf32>
    %c0_2 = arith.constant 0 : index
    %c0_3 = arith.constant 0 : index
    %c0_4 = arith.constant 0 : index
    %1 = vector.load %arg1[%c0_2, %c0_3, %c0_4] : memref<1x1x16xi32, #tpu.memory_space<vmem>>, vector<1x1x16xi32>
    %2 = tpu.iota {dimensions = array<i32: 1>} : vector<1x256x16xi32>
    %3 = vector.broadcast %1 : vector<1x1x16xi32> to vector<1x256x16xi32>
    %4 = arith.cmpi eq, %2, %3 : vector<1x256x16xi32>
    %5 = arith.extui %4 : vector<1x256x16xi1> to vector<1x256x16xi32>
    %6 = arith.sitofp %5 : vector<1x256x16xi32> to vector<1x256x16xf32>
    %cst = arith.constant dense<0.000000e+00> : vector<1x4x16xf32>
    %7 = tpu.matmul %0, %6, %cst {dimension_numbers = #tpu.dot_dimension_numbers<[2], [1], [1], [2], [0, 0, 0, 1, 1, 2], [0], [0]>} : vector<1x4x256xf32>, vector<1x256x16xf32>, vector<1x4x16xf32> -> vector<1x4x16xf32>
    %8 = vector.extract_strided_slice %7 {offsets = [0, 0, 0], sizes = [1, 4, 8], strides = [1, 1, 1]} : vector<1x4x16xf32> to vector<1x4x8xf32>
    %c0_5 = arith.constant 0 : index
    %c0_6 = arith.constant 0 : index
    %c0_7 = arith.constant 0 : index
    %9 = vector.load %arg3[%c0_5, %c0_6, %c0_7] : memref<1x4x8xf32, #tpu.memory_space<vmem>>, vector<1x4x8xf32>
    tpu.vector_store %arg3[%c0_5, %c0_6, %c0_7], %8 {strides = array<i32>} : memref<1x4x8xf32, #tpu.memory_space<vmem>>, vector<1x4x8xf32>,
    %10 = vector.extract_strided_slice %7 {offsets = [0, 0, 8], sizes = [1, 4, 8], strides = [1, 1, 1]} : vector<1x4x16xf32> to vector<1x4x8xf32>
    %c0_8 = arith.constant 0 : index
    %c0_9 = arith.constant 0 : index
    %c0_10 = arith.constant 0 : index
    %11 = vector.load %arg4[%c0_8, %c0_9, %c0_10] : memref<1x4x8xf32, #tpu.memory_space<vmem>>, vector<1x4x8xf32>
    tpu.vector_store %arg4[%c0_8, %c0_9, %c0_10], %10 {strides = array<i32>} : memref<1x4x8xf32, #tpu.memory_space<vmem>>, vector<1x4x8xf32>,
    return
  }
  func.func @transform_0(%arg0: i32) -> (i32, i32, i32) {
    %c0_i32 = arith.constant 0 : i32
    %c0_i32_0 = arith.constant 0 : i32
    %c0_i32_1 = arith.constant 0 : i32
    return %arg0, %c0_i32, %c0_i32_0 : i32, i32, i32
  }
  func.func @transform_1(%arg0: i32) -> (i32, i32, i32) {
    %c0_i32 = arith.constant 0 : i32
    %c0_i32_0 = arith.constant 0 : i32
    %c0_i32_1 = arith.constant 0 : i32
    return %arg0, %c0_i32, %c0_i32_0 : i32, i32, i32
  }
  func.func @transform_2(%arg0: i32) -> (i32, i32, i32) {
    %c0_i32 = arith.constant 0 : i32
    %c0_i32_0 = arith.constant 0 : i32
    %c0_i32_1 = arith.constant 0 : i32
    return %arg0, %c0_i32, %c0_i32_0 : i32, i32, i32
  }
  func.func @transform_3(%arg0: i32) -> (i32, i32, i32) {
    %c0_i32 = arith.constant 0 : i32
    %c0_i32_0 = arith.constant 0 : i32
    %c0_i32_1 = arith.constant 0 : i32
    return %arg0, %c0_i32, %c0_i32_0 : i32, i32, i32
  }
}

</mosaic_0001>

<llo_original>
// kernel: feature_extraction.1
$region0: #{feature_extraction.1}
  #allocation0 [shape = 'u32[]', space=smem, size = 0x4, offset = 0x4, fixed_abs, tag = 'smem constant byte address 0x4 - core index']
  #allocation1 [shape = 'u32[144,128]{1,0:T(1,128)}', space=vmem, size = 0x12000, scoped, tag = 'internal scratch']
  %s0 = inlined_call_operand.vmem [shape: s32[2,1,16], index: 0, kind: input, shape index: {}]
  %s1 = inlined_call_operand.vmem [shape: f32[2,4,256], index: 1, kind: input, shape index: {}]
  %s2 = inlined_call_operand.hbm [shape: f32[2,4,8], index: 2, kind: output, shape index: {0}]
  %s3 = inlined_call_operand.hbm [shape: f32[2,4,8], index: 3, kind: output, shape index: {1}]
  %4 = xla_tuple %s2, %s3
  %s5 = sld [smem:[#allocation0]]
  $region49: #{feature_extraction.1} parent=0
    _
  %s7 = ssub.s32 1, %s5
  %s8 = scalar_select 0, %s7, %s5
  $region1: #{feature_extraction.1} parent=0
    #allocation2 [shape = 'u8[4096]{0}', space=vmem, size = 0x1000, scoped, tag = 'output window, operand 0']
    #allocation3 [shape = 's32[2]{0}', space=sflag, size = 0x8, scoped, tag = 'scoped memory for feature_extraction.1']
    #allocation4 [shape = 'u8[4096]{0}', space=vmem, size = 0x1000, scoped, tag = 'output window, operand 1']
    #allocation5 [shape = 's32[2]{0}', space=sflag, size = 0x8, scoped, tag = 'scoped memory for feature_extraction.1']
    %9 = vsyncpa [#allocation3], 0
    %s10 = scalar_lea.sflag [#allocation3], 1
    %11 = vsyncpa %s10, 0
    %12 = vsyncpa [#allocation5], 0
    %s13 = scalar_lea.sflag [#allocation5], 1
    %14 = vsyncpa %s13, 0
    loop: start=0, step=1, limit=4
    $region2: #{feature_extraction.1} parent=1 // loop_pre_header
      _
    $region3: #{feature_extraction.1} parent=1 // loop_header
      %s16 = sphi 0, %s20
      %p17 = scmp.ge.s32.totalorder %s16, 4
      %s26 = sphi 0, %s28
      %s29 = sphi 0, %s26
      %s30 = sphi 0, %s29
      %s46 = sphi 0, %s30
      %s52 = sphi 0, %s54
      %s55 = sphi 0, %s52
      %s56 = sphi 0, %s55
      %s72 = sphi 0, %s56
      %s78 = sphi 0, %s80
      %s81 = sphi 0, %s78
      %s82 = sphi 0, %s81
      %s98 = sphi 0, %s82
      %s104 = sphi 0, %s106
      %s107 = sphi 0, %s104
      %s108 = sphi 0, %s107
      %s124 = sphi 0, %s108
    $region4: #{feature_extraction.1} parent=1 // loop_header_branch
      %19 = sbr.rel (%p17) target = $region8
    $region5: #{feature_extraction.1} parent=1 // loop_body
      %s21 = ssub.s32 %s16, 1
      %s22 = ssub.s32 %s16, 2
      %s23 = sadd.s32 %s16, 1
      %s24 = ssub.s32 %s16, %s23
      %p25 = scmp.eq.s32.totalorder %s24, 0
      %s27 = sadd.s32 %s26, 1
      %s28 = scalar_select %p25, %s26, %s27
      %p31 = pneg %p25
      %p32 = scmp.eq.s32.totalorder %s16, 1
      %p33 = por %p31, %p32
      %p34 = scmp.ne.s32.totalorder %s26, %s29
      %p35 = scmp.eq.s32.totalorder %s16, 0
      %p36 = por %p34, %p35
      %p37 = scmp.ne.s32.totalorder %s26, %s29
      %p38 = scmp.eq.s32.totalorder %s21, 1
      %p39 = por %p37, %p38
      %p40 = scmp.ne.s32.totalorder %s29, %s30
      %p41 = scmp.eq.s32.totalorder %s21, 0
      %p42 = por %p40, %p41
      %p43 = scmp.ne.s32.totalorder %s29, %s30
      %p44 = scmp.eq.s32.totalorder %s22, 1
      %p45 = por %p43, %p44
      %p47 = scmp.ne.s32.totalorder %s30, %s46
      %p48 = scmp.eq.s32.totalorder %s22, 0
      %p49 = por %p47, %p48
      %s50 = ssub.s32 %s16, %s23
      %p51 = scmp.eq.s32.totalorder %s50, 0
      %s53 = sadd.s32 %s52, 1
      %s54 = scalar_select %p51, %s52, %s53
      %p57 = pneg %p51
      %p58 = scmp.eq.s32.totalorder %s16, 1
      %p59 = por %p57, %p58
      %p60 = scmp.ne.s32.totalorder %s52, %s55
      %p61 = scmp.eq.s32.totalorder %s16, 0
      %p62 = por %p60, %p61
      %p63 = scmp.ne.s32.totalorder %s52, %s55
      %p64 = scmp.eq.s32.totalorder %s21, 1
      %p65 = por %p63, %p64
      %p66 = scmp.ne.s32.totalorder %s55, %s56
      %p67 = scmp.eq.s32.totalorder %s21, 0
      %p68 = por %p66, %p67
      %p69 = scmp.ne.s32.totalorder %s55, %s56
      %p70 = scmp.eq.s32.totalorder %s22, 1
      %p71 = por %p69, %p70
      %p73 = scmp.ne.s32.totalorder %s56, %s72
      %p74 = scmp.eq.s32.totalorder %s22, 0
      %p75 = por %p73, %p74
      %s76 = ssub.s32 %s16, %s23
      %p77 = scmp.eq.s32.totalorder %s76, 0
      %s79 = sadd.s32 %s78, 1
      %s80 = scalar_select %p77, %s78, %s79
      %p83 = pneg %p77
      %p84 = scmp.eq.s32.totalorder %s16, 1
      %p85 = por %p83, %p84
      %p86 = scmp.ne.s32.totalorder %s78, %s81
      %p87 = scmp.eq.s32.totalorder %s16, 0
      %p88 = por %p86, %p87
      %p89 = scmp.ne.s32.totalorder %s78, %s81
      %p90 = scmp.eq.s32.totalorder %s21, 1
      %p91 = por %p89, %p90
      %p92 = scmp.ne.s32.totalorder %s81, %s82
      %p93 = scmp.eq.s32.totalorder %s21, 0
      %p94 = por %p92, %p93
      %p95 = scmp.ne.s32.totalorder %s81, %s82
      %p96 = scmp.eq.s32.totalorder %s22, 1
      %p97 = por %p95, %p96
      %p99 = scmp.ne.s32.totalorder %s82, %s98
      %p100 = scmp.eq.s32.totalorder %s22, 0
      %p101 = por %p99, %p100
      %s102 = ssub.s32 %s16, %s23
      %p103 = scmp.eq.s32.totalorder %s102, 0
      %s105 = sadd.s32 %s104, 1
      %s106 = scalar_select %p103, %s104, %s105
      %p109 = pneg %p103
      %p110 = scmp.eq.s32.totalorder %s16, 1
      %p111 = por %p109, %p110
      %p112 = scmp.ne.s32.totalorder %s104, %s107
      %p113 = scmp.eq.s32.totalorder %s16, 0
      %p114 = por %p112, %p113
      %p115 = scmp.ne.s32.totalorder %s104, %s107
      %p116 = scmp.eq.s32.totalorder %s21, 1
      %p117 = por %p115, %p116
      %p118 = scmp.ne.s32.totalorder %s107, %s108
      %p119 = scmp.eq.s32.totalorder %s21, 0
      %p120 = por %p118, %p119
      %p121 = scmp.ne.s32.totalorder %s107, %s108
      %p122 = scmp.eq.s32.totalorder %s22, 1
      %p123 = por %p121, %p122
      %p125 = scmp.ne.s32.totalorder %s108, %s124
      %p126 = scmp.eq.s32.totalorder %s22, 0
      %p127 = por %p125, %p126
      %p128 = scmp.le.s32.totalorder 1, %s16
      %p129 = scmp.lt.s32.totalorder %s16, 3
      %p130 = pnand %p128, %p129
      %p131 = pneg %p130
      // Predicated region
      $region9: #{feature_extraction.1} parent=5 // pred_check
        _
      $region10: #{feature_extraction.1} parent=5 // pred_check_branch
        %133 = sbr.rel (%p130) target = $region12
      $region11: #{feature_extraction.1} parent=5 // pred_region
        %s134 = ssub.s32 %s16, 1
      $region12: #{feature_extraction.1} parent=5 // pred_fallthru
        _
      %p135 = scmp.lt.s32.totalorder %s16, 2
      // Predicated region
      $region13: #{feature_extraction.1} parent=5 // pred_check
        %p136 = pneg %p135
      $region14: #{feature_extraction.1} parent=5 // pred_check_branch
        %138 = sbr.rel (%p136) target = $region16
      $region15: #{feature_extraction.1} parent=5 // pred_region
        // Predicated region
        $region17: #{feature_extraction.1} parent=15 // pred_check
          %p139 = pneg %p36
        $region18: #{feature_extraction.1} parent=15 // pred_check_branch
          %141 = sbr.rel (%p139) target = $region20
        $region19: #{feature_extraction.1} parent=15 // pred_region
          %p142 = scmp.lt.s32.totalorder %s16, 1
          %s143 = scalar_select %p142, %s16, 1
          %s144 = scalar_lea.vmem %s0, %s143
        $region20: #{feature_extraction.1} parent=15 // pred_fallthru
          _
        // Predicated region
        $region21: #{feature_extraction.1} parent=15 // pred_check
          %p145 = pneg %p62
        $region22: #{feature_extraction.1} parent=15 // pred_check_branch
          %147 = sbr.rel (%p145) target = $region24
        $region23: #{feature_extraction.1} parent=15 // pred_region
          %p148 = scmp.lt.s32.totalorder %s16, 1
          %s149 = scalar_select %p148, %s16, 1
          %s150 = smul.addr %s149, 2
          %s151 = smul.addr %s150, 4
          %s152 = scalar_lea.vmem %s1, %s151
        $region24: #{feature_extraction.1} parent=15 // pred_fallthru
          _
      $region16: #{feature_extraction.1} parent=5 // pred_fallthru
        _
      %p153 = scmp.le.s32.totalorder 1, %s16
      %p154 = scmp.lt.s32.totalorder %s16, 3
      %p155 = pnand %p153, %p154
      %p156 = pneg %p155
      // Predicated region
      $region25: #{feature_extraction.1} parent=5 // pred_check
        _
      $region26: #{feature_extraction.1} parent=5 // pred_check_branch
        %158 = sbr.rel (%p155) target = $region28
      $region27: #{feature_extraction.1} parent=5 // pred_region
        %s159 = ssub.s32 %s16, 1
        %p160 = scmp.lt.s32.totalorder %s21, 1
        %s161 = scalar_select %p160, %s21, 1
        %s162 = scalar_lea.vmem %s0, %s161
        %p163 = pneg %p42
        %p164 = pneg %p39
        %p165 = scmp.lt.s32.totalorder %s21, 1
        %s166 = scalar_select %p165, %s21, 1
        %s167 = smul.addr %s166, 2
        %s168 = smul.addr %s167, 4
        %s169 = scalar_lea.vmem %s1, %s168
        %p170 = pneg %p68
        %p171 = pneg %p65
        %p172 = pneg %p94
        %p173 = pneg %p91
        %s174 = sand.u32 %s81, 1
        %s175 = scalar_lea.sflag [#allocation3], %s174
        %s176 = sand.u32 %s81, 1
        %s177 = smul.addr %s176, 4
        %s178 = scalar_lea.vmem [#allocation2], %s177
        %p179 = pneg %p120
        %p180 = pneg %p117
        %s181 = sand.u32 %s107, 1
        %s182 = scalar_lea.sflag [#allocation5], %s181
        %s183 = sand.u32 %s107, 1
        %s184 = smul.addr %s183, 4
        %s185 = scalar_lea.vmem [#allocation4], %s184
        %p186 = scmp.lt.s32.totalorder %s21, 1
        %s187 = scalar_select %p186, %s21, 1
        %s188 = scalar_lea.vmem %s0, %s187
        %p189 = scmp.lt.s32.totalorder %s21, 1
        %s190 = scalar_select %p189, %s21, 1
        %s191 = smul.addr %s190, 2
        %s192 = smul.addr %s191, 4
        %s193 = scalar_lea.vmem %s1, %s192
        %v194 = vld [vmem:[%s193] sm:$0xff]
        %v195 = vld [vmem:[%s188] sm:$0x1]
        %v196 = vlaneseq
        %v197 = vshrl.u32 %v196, 7
        %v198 = vadd.s32 %v197, 8
        %v199 = vadd.s32 %v197, 16
        %v200 = vadd.s32 %v197, 24
        %v201 = vadd.s32 %v197, 32
        %v202 = vadd.s32 %v197, 40
        %v203 = vadd.s32 %v197, 48
        %v204 = vadd.s32 %v197, 56
        %v205 = vadd.s32 %v197, 64
        %v206 = vadd.s32 %v197, 72
        %v207 = vadd.s32 %v197, 80
        %v208 = vadd.s32 %v197, 88
        %v209 = vadd.s32 %v197, 96
        %v210 = vadd.s32 %v197, 104
        %v211 = vadd.s32 %v197, 112
        %v212 = vadd.s32 %v197, 120
        %v213 = vadd.s32 %v197, 128
        %v214 = vadd.s32 %v197, 136
        %v215 = vadd.s32 %v197, 144
        %v216 = vadd.s32 %v197, 152
        %v217 = vadd.s32 %v197, 160
        %v218 = vadd.s32 %v197, 168
        %v219 = vadd.s32 %v197, 176
        %v220 = vadd.s32 %v197, 184
        %v221 = vadd.s32 %v197, 192
        %v222 = vadd.s32 %v197, 200
        %v223 = vadd.s32 %v197, 208
        %v224 = vadd.s32 %v197, 216
        %v225 = vadd.s32 %v197, 224
        %v226 = vadd.s32 %v197, 232
        %v227 = vadd.s32 %v197, 240
        %v228 = vadd.s32 %v197, 248
        %v229 = vlaneseq
        %v230 = vshrl.u32 %v229, 7
        %v231 = vsub.s32 0, %v230
        %v232 = vrot.slane %v195, %v231
        %vm233 = vcmp.eq.s32.totalorder %v197, %v232
        %vm234 = vcmp.eq.s32.totalorder %v198, %v232
        %vm235 = vcmp.eq.s32.totalorder %v199, %v232
        %vm236 = vcmp.eq.s32.totalorder %v200, %v232
        %vm237 = vcmp.eq.s32.totalorder %v201, %v232
        %vm238 = vcmp.eq.s32.totalorder %v202, %v232
        %vm239 = vcmp.eq.s32.totalorder %v203, %v232
        %vm240 = vcmp.eq.s32.totalorder %v204, %v232
        %vm241 = vcmp.eq.s32.totalorder %v205, %v232
        %vm242 = vcmp.eq.s32.totalorder %v206, %v232
        %vm243 = vcmp.eq.s32.totalorder %v207, %v232
        %vm244 = vcmp.eq.s32.totalorder %v208, %v232
        %vm245 = vcmp.eq.s32.totalorder %v209, %v232
        %vm246 = vcmp.eq.s32.totalorder %v210, %v232
        %vm247 = vcmp.eq.s32.totalorder %v211, %v232
        %vm248 = vcmp.eq.s32.totalorder %v212, %v232
        %vm249 = vcmp.eq.s32.totalorder %v213, %v232
        %vm250 = vcmp.eq.s32.totalorder %v214, %v232
        %vm251 = vcmp.eq.s32.totalorder %v215, %v232
        %vm252 = vcmp.eq.s32.totalorder %v216, %v232
        %vm253 = vcmp.eq.s32.totalorder %v217, %v232
        %vm254 = vcmp.eq.s32.totalorder %v218, %v232
        %vm255 = vcmp.eq.s32.totalorder %v219, %v232
        %vm256 = vcmp.eq.s32.totalorder %v220, %v232
        %vm257 = vcmp.eq.s32.totalorder %v221, %v232
        %vm258 = vcmp.eq.s32.totalorder %v222, %v232
        %vm259 = vcmp.eq.s32.totalorder %v223, %v232
        %vm260 = vcmp.eq.s32.totalorder %v224, %v232
        %vm261 = vcmp.eq.s32.totalorder %v225, %v232
        %vm262 = vcmp.eq.s32.totalorder %v226, %v232
        %vm263 = vcmp.eq.s32.totalorder %v227, %v232
        %vm264 = vcmp.eq.s32.totalorder %v228, %v232
        %v265 = vsel %vm233, 1, 0
        %v266 = vsel %vm234, 1, 0
        %v267 = vsel %vm235, 1, 0
        %v268 = vsel %vm236, 1, 0
        %v269 = vsel %vm237, 1, 0
        %v270 = vsel %vm238, 1, 0
        %v271 = vsel %vm239, 1, 0
        %v272 = vsel %vm240, 1, 0
        %v273 = vsel %vm241, 1, 0
        %v274 = vsel %vm242, 1, 0
        %v275 = vsel %vm243, 1, 0
        %v276 = vsel %vm244, 1, 0
        %v277 = vsel %vm245, 1, 0
        %v278 = vsel %vm246, 1, 0
        %v279 = vsel %vm247, 1, 0
        %v280 = vsel %vm248, 1, 0
        %v281 = vsel %vm249, 1, 0
        %v282 = vsel %vm250, 1, 0
        %v283 = vsel %vm251, 1, 0
        %v284 = vsel %vm252, 1, 0
        %v285 = vsel %vm253, 1, 0
        %v286 = vsel %vm254, 1, 0
        %v287 = vsel %vm255, 1, 0
        %v288 = vsel %vm256, 1, 0
        %v289 = vsel %vm257, 1, 0
        %v290 = vsel %vm258, 1, 0
        %v291 = vsel %vm259, 1, 0
        %v292 = vsel %vm260, 1, 0
        %v293 = vsel %vm261, 1, 0
        %v294 = vsel %vm262, 1, 0
        %v295 = vsel %vm263, 1, 0
        %v296 = vsel %vm264, 1, 0
        %v297 = vcvt.s32.f32 %v265
        %v298 = vcvt.s32.f32 %v266
        %v299 = vcvt.s32.f32 %v267
        %v300 = vcvt.s32.f32 %v268
        %v301 = vcvt.s32.f32 %v269
        %v302 = vcvt.s32.f32 %v270
        %v303 = vcvt.s32.f32 %v271
        %v304 = vcvt.s32.f32 %v272
        %v305 = vcvt.s32.f32 %v273
        %v306 = vcvt.s32.f32 %v274
        %v307 = vcvt.s32.f32 %v275
        %v308 = vcvt.s32.f32 %v276
        %v309 = vcvt.s32.f32 %v277
        %v310 = vcvt.s32.f32 %v278
        %v311 = vcvt.s32.f32 %v279
        %v312 = vcvt.s32.f32 %v280
        %v313 = vcvt.s32.f32 %v281
        %v314 = vcvt.s32.f32 %v282
        %v315 = vcvt.s32.f32 %v283
        %v316 = vcvt.s32.f32 %v284
        %v317 = vcvt.s32.f32 %v285
        %v318 = vcvt.s32.f32 %v286
        %v319 = vcvt.s32.f32 %v287
        %v320 = vcvt.s32.f32 %v288
        %v321 = vcvt.s32.f32 %v289
        %v322 = vcvt.s32.f32 %v290
        %v323 = vcvt.s32.f32 %v291
        %v324 = vcvt.s32.f32 %v292
        %v325 = vcvt.s32.f32 %v293
        %v326 = vcvt.s32.f32 %v294
        %v327 = vcvt.s32.f32 %v295
        %v328 = vcvt.s32.f32 %v296
        %v330 = vcombine.high %v194, %v194
        %332 = vmatprep.subr.mxu0 0.0
        %333 = vmatpush1.msra.mxu0 %v312
        %334 = vmatprep.subr.mxu0 0.0
        %335 = vmatpush1.msra.mxu0 %v311
        %336 = vmatprep.subr.mxu0 0.0
        %337 = vmatpush1.msra.mxu0 %v310
        %338 = vmatprep.subr.mxu0 0.0
        %339 = vmatpush1.msra.mxu0 %v309
        %340 = vmatprep.subr.mxu0 0.0
        %341 = vmatpush1.msra.mxu0 %v308
        %342 = vmatprep.subr.mxu0 0.0
        %343 = vmatpush1.msra.mxu0 %v307
        %344 = vmatprep.subr.mxu0 0.0
        %345 = vmatpush1.msra.mxu0 %v306
        %346 = vmatprep.subr.mxu0 0.0
        %347 = vmatpush1.msra.mxu0 %v305
        %348 = vmatprep.subr.mxu0 0.0
        %349 = vmatpush1.msra.mxu0 %v304
        %350 = vmatprep.subr.mxu0 0.0
        %351 = vmatpush1.msra.mxu0 %v303
        %352 = vmatprep.subr.mxu0 0.0
        %353 = vmatpush1.msra.mxu0 %v302
        %354 = vmatprep.subr.mxu0 0.0
        %355 = vmatpush1.msra.mxu0 %v301
        %356 = vmatprep.subr.mxu0 0.0
        %357 = vmatpush1.msra.mxu0 %v300
        %358 = vmatprep.subr.mxu0 0.0
        %359 = vmatpush1.msra.mxu0 %v299
        %360 = vmatprep.subr.mxu0 0.0
        %361 = vmatpush1.msra.mxu0 %v298
        %362 = vmatprep.subr.mxu0 0.0
        %363 = vmatpush1.msra.mxu0 %v297
        %364 = vmatprep.subr.mxu0 0.0
        %365 = vmatpush2.msra.mxu0 %v328
        %366 = vmatprep.subr.mxu0 0.0
        %367 = vmatpush2.msra.mxu0 %v327
        %368 = vmatprep.subr.mxu0 0.0
        %369 = vmatpush2.msra.mxu0 %v326
        %370 = vmatprep.subr.mxu0 0.0
        %371 = vmatpush2.msra.mxu0 %v325
        %372 = vmatprep.subr.mxu0 0.0
        %373 = vmatpush2.msra.mxu0 %v324
        %374 = vmatprep.subr.mxu0 0.0
        %375 = vmatpush2.msra.mxu0 %v323
        %376 = vmatprep.subr.mxu0 0.0
        %377 = vmatpush2.msra.mxu0 %v322
        %378 = vmatprep.subr.mxu0 0.0
        %379 = vmatpush2.msra.mxu0 %v321
        %380 = vmatprep.subr.mxu0 0.0
        %381 = vmatpush2.msra.mxu0 %v320
        %382 = vmatprep.subr.mxu0 0.0
        %383 = vmatpush2.msra.mxu0 %v319
        %384 = vmatprep.subr.mxu0 0.0
        %385 = vmatpush2.msra.mxu0 %v318
        %386 = vmatprep.subr.mxu0 0.0
        %387 = vmatpush2.msra.mxu0 %v317
        %388 = vmatprep.subr.mxu0 0.0
        %389 = vmatpush2.msra.mxu0 %v316
        %390 = vmatprep.subr.mxu0 0.0
        %391 = vmatpush2.msra.mxu0 %v315
        %392 = vmatprep.subr.mxu0 0.0
        %393 = vmatpush2.msra.mxu0 %v314
        %394 = vmatprep.subr.mxu0 0.0
        %395 = vmatpush2.msra.mxu0 %v313
        %396 = vmatprep.mubr.f32.mxu0 %v330
        %397 = vmatmul.mubr.f32.gmra.mxu0 %v194
        %v398 = vpop.f32.mrf.mxu0
        %v399 = vadd.f32 0.0, %v398
        %v400 = vpop.f32.mrf.mxu0
        %401 = vdwg.mxu0
        %vm402 = vcmask 60416
        %403 = vst.msk [vmem:[%s178] sm:$0xf] %vm402, %v399
        %405 = vrot.lane.b32.xlu0 %v399, 120
        %v406 = vpop.permute.xlu0 %405
        %408 = vst.msk [vmem:[%s185] sm:$0xf] %vm402, %v406
        %s409 = sand.u32 %s81, 1
        %s410 = scalar_lea.sflag [#allocation3], %s409
        %s411 = sand.u32 %s81, 1
        %s412 = smul.addr %s411, 4
        %s413 = scalar_lea.vmem [#allocation2], %s412
        %s414 = sand.u32 %s107, 1
        %s415 = scalar_lea.sflag [#allocation5], %s414
        %s416 = sand.u32 %s107, 1
        %s417 = smul.addr %s416, 4
        %s418 = scalar_lea.vmem [#allocation4], %s417
        // Predicated region
        $region29: #{feature_extraction.1} parent=27 // pred_check
          %p419 = pneg %p91
        $region30: #{feature_extraction.1} parent=27 // pred_check_branch
          %421 = sbr.rel (%p419) target = $region32
        $region31: #{feature_extraction.1} parent=27 // pred_region
          %s423 = ssub.s32 64, 64
          %424 = vsyncadd %s410, %s423
          %s425 = smul.addr %s21, 64
          %s426 = scalar_lea.hbm %s2, %s425
          %s428 = sshll.u32 %s413, 4
          %s429 = int_to_ptr.vmem [resolvable:$true] %s428
          %431 = dma.vmem_to_hbm [thread:$0]  %s429, 64, %s426, %s410
        $region32: #{feature_extraction.1} parent=27 // pred_fallthru
          _
        // Predicated region
        $region33: #{feature_extraction.1} parent=27 // pred_check
          %p432 = pneg %p117
        $region34: #{feature_extraction.1} parent=27 // pred_check_branch
          %434 = sbr.rel (%p432) target = $region36
        $region35: #{feature_extraction.1} parent=27 // pred_region
          %s436 = ssub.s32 64, 64
          %437 = vsyncadd %s415, %s436
          %s438 = smul.addr %s21, 64
          %s439 = scalar_lea.hbm %s3, %s438
          %s441 = sshll.u32 %s418, 4
          %s442 = int_to_ptr.vmem [resolvable:$true] %s441
          %444 = dma.vmem_to_hbm [thread:$0]  %s442, 64, %s439, %s415
        $region36: #{feature_extraction.1} parent=27 // pred_fallthru
          _
      $region28: #{feature_extraction.1} parent=5 // pred_fallthru
        _
      %p445 = scmp.le.s32.totalorder 2, %s16
      // Predicated region
      $region37: #{feature_extraction.1} parent=5 // pred_check
        %p446 = pneg %p445
      $region38: #{feature_extraction.1} parent=5 // pred_check_branch
        %448 = sbr.rel (%p446) target = $region40
      $region39: #{feature_extraction.1} parent=5 // pred_region
        %s449 = ssub.s32 %s16, 2
        // Predicated region
        $region41: #{feature_extraction.1} parent=39 // pred_check
          %p450 = pneg %p97
        $region42: #{feature_extraction.1} parent=39 // pred_check_branch
          %452 = sbr.rel (%p450) target = $region44
        $region43: #{feature_extraction.1} parent=39 // pred_region
          %s453 = sand.u32 %s82, 1
          %s454 = scalar_lea.sflag [#allocation3], %s453
          %s455 = sand.u32 %s82, 1
          %s456 = smul.addr %s455, 4
          %s457 = scalar_lea.vmem [#allocation2], %s456
          %458 = dma.done %s454, 64
        $region44: #{feature_extraction.1} parent=39 // pred_fallthru
          _
        // Predicated region
        $region45: #{feature_extraction.1} parent=39 // pred_check
          %p459 = pneg %p123
        $region46: #{feature_extraction.1} parent=39 // pred_check_branch
          %461 = sbr.rel (%p459) target = $region48
        $region47: #{feature_extraction.1} parent=39 // pred_region
          %s462 = sand.u32 %s108, 1
          %s463 = scalar_lea.sflag [#allocation5], %s462
          %s464 = sand.u32 %s108, 1
          %s465 = smul.addr %s464, 4
          %s466 = scalar_lea.vmem [#allocation4], %s465
          %467 = dma.done %s463, 64
        $region48: #{feature_extraction.1} parent=39 // pred_fallthru
          _
      $region40: #{feature_extraction.1} parent=5 // pred_fallthru
        _
    $region6: #{feature_extraction.1} parent=1 // loop_footer
      %s20 = sadd.s32 1, %s16
    $region7: #{feature_extraction.1} parent=1 // loop_footer_branch
      %15 = sbr.rel target = $region3
    $region8: #{feature_extraction.1} parent=1 // loop_exit
      _
    %468 = vsyncpa [#allocation3], 1
    %s469 = scalar_lea.sflag [#allocation3], 1
    %470 = vsyncpa %s469, 1
    %471 = vsyncpa [#allocation5], 1
    %s472 = scalar_lea.sflag [#allocation5], 1
    %473 = vsyncpa %s472, 1

</llo_original>
